<compile_context>
chip_gen: v6e
topology: v6e:2x2x1
jax: 0.10.0
libtpu: 0.0.40
codegen_flags: <defaults>
</compile_context>

<pallas_src>
import functools

import jax
import jax.numpy as jnp
from jax.experimental import pallas as pl
from jax.experimental.pallas import tpu as pltpu

_LANE = 128


def _distill_kl_kernel(ys_ref, yt_ref, o_ref, acc_ref, *,
                       inv_T: float, tile_b: int, blocks_per_shard: int,
                       total_b: int, needs_mask: bool):
    s = pl.program_id(0)   # shard (parallel across cores on v7x)
    j = pl.program_id(1)   # batch tile within the shard (sequential reduction)

    @pl.when(j == 0)
    def _init():
        acc_ref[...] = jnp.zeros_like(acc_ref)

    # (tile_b, C) tiles; softmax axis = classes = lane axis (last dim).
    ys = ys_ref[...].astype(jnp.float32) * jnp.float32(inv_T)
    yt = yt_ref[...].astype(jnp.float32) * jnp.float32(inv_T)

    ys_shift = ys - jnp.max(ys, axis=1, keepdims=True)
    yt_shift = yt - jnp.max(yt, axis=1, keepdims=True)

    e_s_sum = jnp.sum(jnp.exp(ys_shift), axis=1, keepdims=True)   # (tile_b, 1)
    e_t = jnp.exp(yt_shift)
    e_t_sum = jnp.sum(e_t, axis=1, keepdims=True)                 # (tile_b, 1)

    # sum_c p_t*(yt_shift - ys_shift)  ==  (1/e_t_sum) * sum_c e_t*(yt_shift - ys_shift)
    cross = jnp.sum(e_t * (yt_shift - ys_shift), axis=1, keepdims=True)

    # Per-row KL contribution (times 1, scaling by T^2/B is done in the wrapper).
    row = (cross * pl.reciprocal(e_t_sum, approx=True)
           + jnp.log(e_s_sum) - jnp.log(e_t_sum))                 # (tile_b, 1)

    if needs_mask:
        # Only emitted when the padded grid overhangs B. Mask is applied to the
        # (tile_b, 1) row result, so garbage/NaN rows never reach the accumulator
        # (per-row reductions above cannot mix rows, and select drops NaN).
        row_start = (s * blocks_per_shard + j) * tile_b
        row_ids = row_start + jax.lax.broadcasted_iota(jnp.int32, row.shape, 0)
        row = jnp.where(row_ids < total_b, row, 0.0)

    acc_ref[...] += row

    @pl.when(j == pl.num_programs(1) - 1)
    def _finalize():
        total = jnp.sum(acc_ref[...])
        o_ref[...] = jnp.full(o_ref.shape, total, jnp.float32)


def distill_kl(y_s: jax.Array, y_t: jax.Array, T: float, *,
               tile_b: int | None = None, num_shards: int = 2) -> jax.Array:
    """Distillation KL loss. y_s, y_t: (B, C) student/teacher logits."""
    assert y_s.shape == y_t.shape and y_s.ndim == 2
    B, C = y_s.shape
    itemsize = jnp.dtype(y_s.dtype).itemsize

    c_pad = -(-C // _LANE) * _LANE          # lane-padded class count (VMEM footprint)
    in_row = c_pad * itemsize               # bytes/row per input tile in VMEM
    f32_row = c_pad * 4                     # bytes/row per f32 intermediate

    if tile_b is None:
        # Scoped-VMEM target: 2 inputs x 2 pipeline buffers + ~6 full-tile f32
        # intermediates (upcast/shift/exp temporaries). ~40 MiB fits v7x's
        # 64 MiB physical VMEM with headroom and is well under v5e/v6e's 128 MiB.
        budget = 40 << 20
        per_row = 4 * in_row + 6 * f32_row
        tile_b = max(8, budget // per_row)
    if tile_b >= B:
        tile_b = B                          # full dim: always a legal block
    else:
        tile_b = max(8, (tile_b // 8) * 8)  # sublane-aligned

    num_blocks = pl.cdiv(B, tile_b)
    num_shards = max(1, min(int(num_shards), num_blocks))
    bps = pl.cdiv(num_blocks, num_shards)   # blocks per shard
    padded_rows = num_shards * bps * tile_b
    needs_mask = padded_rows != B
    scale = float(T) * float(T) / float(B)  # normalize by TOTAL batch

    # Explicit scoped-VMEM limit: pipeline buffers + f32 intermediates + slack.
    # Capped at 56 MiB so the request never exceeds v7x's 64 MiB physical VMEM.
    vmem_need = 4 * tile_b * in_row + 6 * tile_b * f32_row + (2 << 20)
    vmem_limit = int(min(max(vmem_need, 16 << 20), 56 << 20))

    def in_map(s, j):
        # Clamp so a (possibly) overhanging last block of the last shard never
        # indexes past the array; duplicated rows are removed by the row mask.
        return (jnp.minimum(s * bps + j, num_blocks - 1), 0)

    kernel = functools.partial(
        _distill_kl_kernel,
        inv_T=1.0 / float(T),
        tile_b=tile_b,
        blocks_per_shard=bps,
        total_b=B,
        needs_mask=needs_mask,
    )

    cost = pl.CostEstimate(
        flops=7 * B * C,
        transcendentals=2 * B * C + 2 * B,
        bytes_accessed=2 * B * C * itemsize + num_shards * 4,
    )

    partials = pl.pallas_call(
        kernel,
        # Per-shard partial sums; last two dims match the block exactly so the
        # output write is a plain lane-dense store.
        out_shape=jax.ShapeDtypeStruct((num_shards, 1, _LANE), jnp.float32),
        grid_spec=pltpu.PrefetchScalarGridSpec(
            num_scalar_prefetch=0,
            grid=(num_shards, bps),
            in_specs=[
                pl.BlockSpec((tile_b, C), in_map),
                pl.BlockSpec((tile_b, C), in_map),
            ],
            out_specs=pl.BlockSpec((1, 1, _LANE), lambda s, j: (s, 0, 0)),
            scratch_shapes=[pltpu.VMEM((tile_b, 1), jnp.float32)],
        ),
        compiler_params=pltpu.CompilerParams(
            # Shard axis parallel (uses both TCs on v7x); batch-tile reduction
            # axis sequential.
            dimension_semantics=("parallel", "arbitrary"),
            vmem_limit_bytes=vmem_limit,
        ),
        cost_estimate=cost,
    )(y_s, y_t)

    return jnp.sum(partials[:, 0, 0]) * jnp.float32(scale)


def distill_kl_ref(y_s, y_t, T):
    log_ps = jax.nn.log_softmax(y_s.astype(jnp.float32) / T, axis=1)
    log_pt = jax.nn.log_softmax(y_t.astype(jnp.float32) / T, axis=1)
    p_t = jnp.exp(log_pt)
    return jnp.sum(p_t * (log_pt - log_ps)) * (T ** 2) / y_s.shape[0]


if __name__ == "__main__":
    key = jax.random.PRNGKey(0)
    T = 4.0
    k1, k2, k3, k4, k5, k6 = jax.random.split(key, 6)

    # Case 1: multi-block grid, batch divisible by tile (2 shards x 2 blocks, no mask).
    B, C = 64, 100
    y_s = jax.random.normal(k1, (B, C), dtype=jnp.float32)
    y_t = jax.random.normal(k2, (B, C), dtype=jnp.float32)
    loss = distill_kl(y_s, y_t, T, tile_b=16)
    jax.block_until_ready(loss)
    ref = distill_kl_ref(y_s, y_t, T)
    assert jnp.allclose(loss, ref, rtol=2e-3, atol=1e-4), (loss, ref)

    # Case 2: batch not divisible by the tile (exercises clamped block + row mask).
    B2, C2 = 10, 100
    y_s2 = jax.random.normal(k3, (B2, C2), dtype=jnp.float32)
    y_t2 = jax.random.normal(k4, (B2, C2), dtype=jnp.float32)
    loss2 = distill_kl(y_s2, y_t2, T, tile_b=8)
    jax.block_until_ready(loss2)
    ref2 = distill_kl_ref(y_s2, y_t2, T)
    assert jnp.allclose(loss2, ref2, rtol=2e-3, atol=1e-4), (loss2, ref2)

    # Case 3: bf16 logits, default tiling (single block / single shard path).
    B3, C3 = 32, 128
    y_s3 = jax.random.normal(k5, (B3, C3), dtype=jnp.bfloat16)
    y_t3 = jax.random.normal(k6, (B3, C3), dtype=jnp.bfloat16)
    loss3 = distill_kl(y_s3, y_t3, T)
    jax.block_until_ready(loss3)
    ref3 = distill_kl_ref(y_s3, y_t3, T)
    assert jnp.allclose(loss3, ref3, rtol=2e-3, atol=1e-3), (loss3, ref3)

    print("KERNEL_OK")
</pallas_src>

<mosaic_0001>
module attributes {stable_mosaic.version = 11 : i64} {
  func.func @_distill_kl_kernel(%arg0: i32, %arg1: i32, %arg2: memref<16x100xf32, #tpu.memory_space<vmem>>, %arg3: memref<16x100xf32, #tpu.memory_space<vmem>>, %arg4: memref<1x1x128xf32, #tpu.memory_space<vmem>>, %arg5: memref<16x1xf32, #tpu.memory_space<vmem>>) attributes {dimension_semantics = [#tpu.dimension_semantics<parallel>, #tpu.dimension_semantics<arbitrary>], iteration_bounds = array<i64: 2, 2>, scalar_prefetch = 0 : i64, scratch_operands = 1 : i64, tpu.core_type = #tpu.core_type<tc>, window_params = [{transform_indices = @transform_0, window_bounds = array<i64: 16, 100>}, {transform_indices = @transform_1, window_bounds = array<i64: 16, 100>}, {transform_indices = @transform_2, window_bounds = array<i64: 1, 1, 128>}]} {
    %c0_i32 = arith.constant 0 : i32
    %0 = arith.cmpi eq, %arg1, %c0_i32 : i32
    %1 = arith.extui %0 : i1 to i32
    %c0_i32_0 = arith.constant 0 : i32
    %2 = arith.cmpi ne, %1, %c0_i32_0 : i32
    scf.if %2 {
      %cst_15 = arith.constant 0.000000e+00 : f32
      %39 = vector.broadcast %cst_15 : f32 to vector<16x1xf32>
      %c0_16 = arith.constant 0 : index
      %c0_17 = arith.constant 0 : index
      %40 = vector.load %arg5[%c0_16, %c0_17] : memref<16x1xf32, #tpu.memory_space<vmem>>, vector<16x1xf32>
      tpu.vector_store %arg5[%c0_16, %c0_17], %39 {strides = array<i32>} : memref<16x1xf32, #tpu.memory_space<vmem>>, vector<16x1xf32>,
    } else {
    }
    %c0 = arith.constant 0 : index
    %c0_1 = arith.constant 0 : index
    %3 = vector.load %arg2[%c0, %c0_1] : memref<16x100xf32, #tpu.memory_space<vmem>>, vector<16x100xf32>
    %cst = arith.constant 2.500000e-01 : f32
    %4 = vector.broadcast %cst : f32 to vector<16x100xf32>
    %5 = arith.mulf %3, %4 : vector<16x100xf32>
    %c0_2 = arith.constant 0 : index
    %c0_3 = arith.constant 0 : index
    %6 = vector.load %arg3[%c0_2, %c0_3] : memref<16x100xf32, #tpu.memory_space<vmem>>, vector<16x100xf32>
    %cst_4 = arith.constant 2.500000e-01 : f32
    %7 = vector.broadcast %cst_4 : f32 to vector<16x100xf32>
    %8 = arith.mulf %6, %7 : vector<16x100xf32>
    %cst_5 = arith.constant dense<0xFF800000> : vector<16xf32>
    %9 = vector.multi_reduction <maximumf>, %5, %cst_5 [1] : vector<16x100xf32> to vector<16xf32>
    %10 = vector.shape_cast %9 : vector<16xf32> to vector<16x1xf32>
    %11 = vector.broadcast %10 : vector<16x1xf32> to vector<16x100xf32>
    %12 = arith.subf %5, %11 : vector<16x100xf32>
    %cst_6 = arith.constant dense<0xFF800000> : vector<16xf32>
    %13 = vector.multi_reduction <maximumf>, %8, %cst_6 [1] : vector<16x100xf32> to vector<16xf32>
    %14 = vector.shape_cast %13 : vector<16xf32> to vector<16x1xf32>
    %15 = vector.broadcast %14 : vector<16x1xf32> to vector<16x100xf32>
    %16 = arith.subf %8, %15 : vector<16x100xf32>
    %17 = math.exp %12 : vector<16x100xf32>
    %cst_7 = arith.constant dense<0.000000e+00> : vector<16xf32>
    %18 = vector.multi_reduction <add>, %17, %cst_7 [1] : vector<16x100xf32> to vector<16xf32>
    %19 = vector.shape_cast %18 : vector<16xf32> to vector<16x1xf32>
    %20 = math.exp %16 : vector<16x100xf32>
    %cst_8 = arith.constant dense<0.000000e+00> : vector<16xf32>
    %21 = vector.multi_reduction <add>, %20, %cst_8 [1] : vector<16x100xf32> to vector<16xf32>
    %22 = vector.shape_cast %21 : vector<16xf32> to vector<16x1xf32>
    %23 = arith.subf %16, %12 : vector<16x100xf32>
    %24 = arith.mulf %20, %23 : vector<16x100xf32>
    %cst_9 = arith.constant dense<0.000000e+00> : vector<16xf32>
    %25 = vector.multi_reduction <add>, %24, %cst_9 [1] : vector<16x100xf32> to vector<16xf32>
    %26 = vector.shape_cast %25 : vector<16xf32> to vector<16x1xf32>
    %27 = tpu.reciprocal %22 {approx = true} : vector<16x1xf32> -> vector<16x1xf32>
    %28 = arith.mulf %26, %27 : vector<16x1xf32>
    %29 = math.log %19 : vector<16x1xf32>
    %30 = arith.addf %28, %29 : vector<16x1xf32>
    %31 = math.log %22 : vector<16x1xf32>
    %32 = arith.subf %30, %31 : vector<16x1xf32>
    %c0_10 = arith.constant 0 : index
    %c0_11 = arith.constant 0 : index
    %33 = vector.load %arg5[%c0_10, %c0_11] : memref<16x1xf32, #tpu.memory_space<vmem>>, vector<16x1xf32>
    %34 = arith.addf %33, %32 : vector<16x1xf32>
    %c0_12 = arith.constant 0 : index
    %c0_13 = arith.constant 0 : index
    %35 = vector.load %arg5[%c0_12, %c0_13] : memref<16x1xf32, #tpu.memory_space<vmem>>, vector<16x1xf32>
    tpu.vector_store %arg5[%c0_12, %c0_13], %34 {strides = array<i32>} : memref<16x1xf32, #tpu.memory_space<vmem>>, vector<16x1xf32>,
    %c1_i32 = arith.constant 1 : i32
    %36 = arith.cmpi eq, %arg1, %c1_i32 : i32
    %37 = arith.extui %36 : i1 to i32
    %c0_i32_14 = arith.constant 0 : i32
    %38 = arith.cmpi ne, %37, %c0_i32_14 : i32
    scf.if %38 {
      %c0_15 = arith.constant 0 : index
      %c0_16 = arith.constant 0 : index
      %39 = vector.load %arg5[%c0_15, %c0_16] : memref<16x1xf32, #tpu.memory_space<vmem>>, vector<16x1xf32>
      %40 = vector.shape_cast %39 : vector<16x1xf32> to vector<1x16x1xf32>
      %cst_17 = arith.constant dense<0.000000e+00> : vector<1xf32>
      %41 = vector.multi_reduction <add>, %40, %cst_17 [1, 2] : vector<1x16x1xf32> to vector<1xf32>
      %42 = vector.shape_cast %41 : vector<1xf32> to vector<1x1x1xf32>
      %43 = vector.extract %42[0, 0, 0] : f32 from vector<1x1x1xf32>
      %44 = vector.broadcast %43 : f32 to vector<1x1x128xf32>
      %c0_18 = arith.constant 0 : index
      %c0_19 = arith.constant 0 : index
      %c0_20 = arith.constant 0 : index
      %45 = vector.load %arg4[%c0_18, %c0_19, %c0_20] : memref<1x1x128xf32, #tpu.memory_space<vmem>>, vector<1x1x128xf32>
      tpu.vector_store %arg4[%c0_18, %c0_19, %c0_20], %44 {strides = array<i32>} : memref<1x1x128xf32, #tpu.memory_space<vmem>>, vector<1x1x128xf32>,
    } else {
    }
    return
  }
  func.func @transform_0(%arg0: i32, %arg1: i32) -> (i32, i32) {
    %c2_i32 = arith.constant 2 : i32
    %0 = arith.muli %arg0, %c2_i32 : i32
    %1 = arith.addi %0, %arg1 : i32
    %c3_i32 = arith.constant 3 : i32
    %2 = arith.minsi %1, %c3_i32 : i32
    %c0_i32 = arith.constant 0 : i32
    %c0_i32_0 = arith.constant 0 : i32
    return %2, %c0_i32 : i32, i32
  }
  func.func @transform_1(%arg0: i32, %arg1: i32) -> (i32, i32) {
    %c2_i32 = arith.constant 2 : i32
    %0 = arith.muli %arg0, %c2_i32 : i32
    %1 = arith.addi %0, %arg1 : i32
    %c3_i32 = arith.constant 3 : i32
    %2 = arith.minsi %1, %c3_i32 : i32
    %c0_i32 = arith.constant 0 : i32
    %c0_i32_0 = arith.constant 0 : i32
    return %2, %c0_i32 : i32, i32
  }
  func.func @transform_2(%arg0: i32, %arg1: i32) -> (i32, i32, i32) {
    %c0_i32 = arith.constant 0 : i32
    %c0_i32_0 = arith.constant 0 : i32
    %c0_i32_1 = arith.constant 0 : i32
    return %arg0, %c0_i32, %c0_i32_0 : i32, i32, i32
  }
}

</mosaic_0001>

<llo_original>
// kernel: tpu_custom_call.1
$region0: #{tpu_custom_call.1}
  #allocation0 [shape = 'u32[]', space=smem, size = 0x4, offset = 0x4, fixed_abs, tag = 'smem constant byte address 0x4 - core index']
  #allocation1 [shape = 'u32[144,128]{1,0:T(1,128)}', space=vmem, size = 0x12000, scoped, tag = 'internal scratch']
  #allocation2 [shape = 'f32[16,1]{1,0:T(8,128)}', space=vmem, size = 0x2000, scoped, tag = 'scratch operand']
  %s0 = inlined_call_operand.hbm [shape: f32[64,100], index: 0, kind: input, shape index: {}]
  %s1 = inlined_call_operand.hbm [shape: f32[64,100], index: 1, kind: input, shape index: {}]
  %s2 = inlined_call_operand.hbm [shape: f32[2,1,128], index: 2, kind: output, shape index: {}]
  %s3 = sld [smem:[#allocation0]]
  $region57: #{tpu_custom_call.1} parent=0
    _
  %s5 = ssub.s32 1, %s3
  %s6 = scalar_select 0, %s5, %s3
  $region1: #{tpu_custom_call.1} parent=0
    #allocation3 [shape = 'u8[16384]{0}', space=vmem, size = 0x4000, scoped, tag = 'input window, operand 0']
    #allocation4 [shape = 's32[2]{0}', space=sflag, size = 0x8, scoped, tag = 'scoped memory for tpu_custom_call.1']
    #allocation5 [shape = 's32[2]{0}', space=sflag, size = 0x8, scoped, tag = 'scoped memory for tpu_custom_call.1']
    #allocation6 [shape = 'u8[16384]{0}', space=vmem, size = 0x4000, scoped, tag = 'input window, operand 1']
    #allocation7 [shape = 's32[2]{0}', space=sflag, size = 0x8, scoped, tag = 'scoped memory for tpu_custom_call.1']
    #allocation8 [shape = 'u8[1024]{0}', space=vmem, size = 0x400, scoped, tag = 'output window, operand 0']
    %7 = vsyncpa [#allocation4], 0
    %s8 = scalar_lea.sflag [#allocation4], 1
    %9 = vsyncpa %s8, 0
    %10 = vsyncpa [#allocation7], 0
    %s11 = scalar_lea.sflag [#allocation7], 1
    %12 = vsyncpa %s11, 0
    %13 = vsyncpa [#allocation5], 0
    %s14 = scalar_lea.sflag [#allocation5], 1
    %15 = vsyncpa %s14, 0
    loop: start=0, step=1, limit=6
    $region2: #{tpu_custom_call.1} parent=1 // loop_pre_header
      _
    $region3: #{tpu_custom_call.1} parent=1 // loop_header
      %s17 = sphi 0, %s21
      %p18 = scmp.ge.s32.totalorder %s17, 6
      %s24 = sphi 0, %s36
      %s25 = sphi 0, %s32
      %s26 = sphi 0, %s24
      %s27 = sphi 0, %s25
      %s28 = sphi 0, %s26
      %s29 = sphi 0, %s27
      %s47 = sphi 0, %s49
      %s50 = sphi 0, %s47
      %s51 = sphi 0, %s50
      %s67 = sphi 0, %s51
      %s81 = sphi 0, %s83
      %s84 = sphi 0, %s81
      %s85 = sphi 0, %s84
      %s101 = sphi 0, %s85
      %s107 = sphi 0, %s109
      %s110 = sphi 0, %s107
      %s111 = sphi 0, %s110
      %s127 = sphi 0, %s111
    $region4: #{tpu_custom_call.1} parent=1 // loop_header_branch
      %20 = sbr.rel (%p18) target = $region8
    $region5: #{tpu_custom_call.1} parent=1 // loop_body
      %s22 = ssub.s32 %s17, 1
      %s23 = ssub.s32 %s17, 2
      %s30 = sadd.s32 1, %s25
      %p31 = scmp.ge.s32.totalorder %s30, 2
      %s32 = scalar_select %p31, 0, %s30
      %s33 = sadd.s32 1, %s24
      %s34 = scalar_select %p31, %s33, %s24
      %p35 = scmp.ge.s32.totalorder %s34, 2
      %s36 = scalar_select %p35, 0, %s34
      %s37 = smul.u32 %s24, 2
      %s38 = sadd.s32 %s37, %s25
      %p39 = scmp.lt.s32.totalorder %s38, 3
      %s40 = scalar_select %p39, %s38, 3
      %s41 = smul.u32 %s36, 2
      %s42 = sadd.s32 %s41, %s32
      %p43 = scmp.lt.s32.totalorder %s42, 3
      %s44 = scalar_select %p43, %s42, 3
      %s45 = ssub.s32 %s40, %s44
      %p46 = scmp.eq.s32.totalorder %s45, 0
      %s48 = sadd.s32 %s47, 1
      %s49 = scalar_select %p46, %s47, %s48
      %p52 = pneg %p46
      %p53 = scmp.eq.s32.totalorder %s17, 3
      %p54 = por %p52, %p53
      %p55 = scmp.ne.s32.totalorder %s47, %s50
      %p56 = scmp.eq.s32.totalorder %s17, 0
      %p57 = por %p55, %p56
      %p58 = scmp.ne.s32.totalorder %s47, %s50
      %p59 = scmp.eq.s32.totalorder %s22, 3
      %p60 = por %p58, %p59
      %p61 = scmp.ne.s32.totalorder %s50, %s51
      %p62 = scmp.eq.s32.totalorder %s22, 0
      %p63 = por %p61, %p62
      %p64 = scmp.ne.s32.totalorder %s50, %s51
      %p65 = scmp.eq.s32.totalorder %s23, 3
      %p66 = por %p64, %p65
      %p68 = scmp.ne.s32.totalorder %s51, %s67
      %p69 = scmp.eq.s32.totalorder %s23, 0
      %p70 = por %p68, %p69
      %s71 = smul.u32 %s24, 2
      %s72 = sadd.s32 %s71, %s25
      %p73 = scmp.lt.s32.totalorder %s72, 3
      %s74 = scalar_select %p73, %s72, 3
      %s75 = smul.u32 %s36, 2
      %s76 = sadd.s32 %s75, %s32
      %p77 = scmp.lt.s32.totalorder %s76, 3
      %s78 = scalar_select %p77, %s76, 3
      %s79 = ssub.s32 %s74, %s78
      %p80 = scmp.eq.s32.totalorder %s79, 0
      %s82 = sadd.s32 %s81, 1
      %s83 = scalar_select %p80, %s81, %s82
      %p86 = pneg %p80
      %p87 = scmp.eq.s32.totalorder %s17, 3
      %p88 = por %p86, %p87
      %p89 = scmp.ne.s32.totalorder %s81, %s84
      %p90 = scmp.eq.s32.totalorder %s17, 0
      %p91 = por %p89, %p90
      %p92 = scmp.ne.s32.totalorder %s81, %s84
      %p93 = scmp.eq.s32.totalorder %s22, 3
      %p94 = por %p92, %p93
      %p95 = scmp.ne.s32.totalorder %s84, %s85
      %p96 = scmp.eq.s32.totalorder %s22, 0
      %p97 = por %p95, %p96
      %p98 = scmp.ne.s32.totalorder %s84, %s85
      %p99 = scmp.eq.s32.totalorder %s23, 3
      %p100 = por %p98, %p99
      %p102 = scmp.ne.s32.totalorder %s85, %s101
      %p103 = scmp.eq.s32.totalorder %s23, 0
      %p104 = por %p102, %p103
      %s105 = ssub.s32 %s24, %s36
      %p106 = scmp.eq.s32.totalorder %s105, 0
      %s108 = sadd.s32 %s107, 1
      %s109 = scalar_select %p106, %s107, %s108
      %p112 = pneg %p106
      %p113 = scmp.eq.s32.totalorder %s17, 3
      %p114 = por %p112, %p113
      %p115 = scmp.ne.s32.totalorder %s107, %s110
      %p116 = scmp.eq.s32.totalorder %s17, 0
      %p117 = por %p115, %p116
      %p118 = scmp.ne.s32.totalorder %s107, %s110
      %p119 = scmp.eq.s32.totalorder %s22, 3
      %p120 = por %p118, %p119
      %p121 = scmp.ne.s32.totalorder %s110, %s111
      %p122 = scmp.eq.s32.totalorder %s22, 0
      %p123 = por %p121, %p122
      %p124 = scmp.ne.s32.totalorder %s110, %s111
      %p125 = scmp.eq.s32.totalorder %s23, 3
      %p126 = por %p124, %p125
      %p128 = scmp.ne.s32.totalorder %s111, %s127
      %p129 = scmp.eq.s32.totalorder %s23, 0
      %p130 = por %p128, %p129
      %p131 = scmp.le.s32.totalorder 1, %s17
      %p132 = scmp.lt.s32.totalorder %s17, 5
      %p133 = pnand %p131, %p132
      %p134 = pneg %p133
      // Predicated region
      $region9: #{tpu_custom_call.1} parent=5 // pred_check
        _
      $region10: #{tpu_custom_call.1} parent=5 // pred_check_branch
        %136 = sbr.rel (%p133) target = $region12
      $region11: #{tpu_custom_call.1} parent=5 // pred_region
        %s137 = ssub.s32 %s17, 1
      $region12: #{tpu_custom_call.1} parent=5 // pred_fallthru
        _
      %p138 = scmp.lt.s32.totalorder %s17, 4
      // Predicated region
      $region13: #{tpu_custom_call.1} parent=5 // pred_check
        %p139 = pneg %p138
      $region14: #{tpu_custom_call.1} parent=5 // pred_check_branch
        %141 = sbr.rel (%p139) target = $region16
      $region15: #{tpu_custom_call.1} parent=5 // pred_region
        // Predicated region
        $region17: #{tpu_custom_call.1} parent=15 // pred_check
          %p142 = pneg %p57
        $region18: #{tpu_custom_call.1} parent=15 // pred_check_branch
          %144 = sbr.rel (%p142) target = $region20
        $region19: #{tpu_custom_call.1} parent=15 // pred_region
          %s145 = sand.u32 %s47, 1
          %s146 = scalar_lea.sflag [#allocation4], %s145
          %s147 = sand.u32 %s47, 1
          %s148 = smul.addr %s147, 16
          %s149 = scalar_lea.vmem [#allocation3], %s148
          %s150 = smul.u32 %s24, 2
          %s151 = sadd.s32 %s150, %s25
          %p152 = scmp.lt.s32.totalorder %s151, 3
          %s153 = scalar_select %p152, %s151, 3
          %s154 = smul.u32 2, %s153
          %s156 = ssub.s32 256, 256
          %157 = vsyncadd %s146, %s156
          %s158 = smul.addr %s154, 128
          %s159 = scalar_lea.hbm %s0, %s158
          %s160 = sshll.u32 %s149, 4
          %s161 = int_to_ptr.vmem [resolvable:$true] %s160
          %166 = dma.hbm_to_vmem [thread:$0]  %s159, 256, %s161, %s146, 128, 128, 8
        $region20: #{tpu_custom_call.1} parent=15 // pred_fallthru
          _
        // Predicated region
        $region21: #{tpu_custom_call.1} parent=15 // pred_check
          %p167 = pneg %p91
        $region22: #{tpu_custom_call.1} parent=15 // pred_check_branch
          %169 = sbr.rel (%p167) target = $region24
        $region23: #{tpu_custom_call.1} parent=15 // pred_region
          %s170 = sand.u32 %s81, 1
          %s171 = scalar_lea.sflag [#allocation7], %s170
          %s172 = sand.u32 %s81, 1
          %s173 = smul.addr %s172, 16
          %s174 = scalar_lea.vmem [#allocation6], %s173
          %s175 = smul.u32 %s24, 2
          %s176 = sadd.s32 %s175, %s25
          %p177 = scmp.lt.s32.totalorder %s176, 3
          %s178 = scalar_select %p177, %s176, 3
          %s179 = smul.u32 2, %s178
          %s181 = ssub.s32 256, 256
          %182 = vsyncadd %s171, %s181
          %s183 = smul.addr %s179, 128
          %s184 = scalar_lea.hbm %s1, %s183
          %s185 = sshll.u32 %s174, 4
          %s186 = int_to_ptr.vmem [resolvable:$true] %s185
          %191 = dma.hbm_to_vmem [thread:$0]  %s184, 256, %s186, %s171, 128, 128, 8
        $region24: #{tpu_custom_call.1} parent=15 // pred_fallthru
          _
      $region16: #{tpu_custom_call.1} parent=5 // pred_fallthru
        _
      %p192 = scmp.le.s32.totalorder 1, %s17
      %p193 = scmp.lt.s32.totalorder %s17, 5
      %p194 = pnand %p192, %p193
      %p195 = pneg %p194
      // Predicated region
      $region25: #{tpu_custom_call.1} parent=5 // pred_check
        _
      $region26: #{tpu_custom_call.1} parent=5 // pred_check_branch
        %197 = sbr.rel (%p194) target = $region28
      $region27: #{tpu_custom_call.1} parent=5 // pred_region
        %s198 = ssub.s32 %s17, 1
        %s199 = sand.u32 %s50, 1
        %s200 = scalar_lea.sflag [#allocation4], %s199
        %s201 = sand.u32 %s50, 1
        %s202 = smul.addr %s201, 16
        %s203 = scalar_lea.vmem [#allocation3], %s202
        // Predicated region
        $region29: #{tpu_custom_call.1} parent=27 // pred_check
          %p204 = pneg %p63
        $region30: #{tpu_custom_call.1} parent=27 // pred_check_branch
          %206 = sbr.rel (%p204) target = $region32
        $region31: #{tpu_custom_call.1} parent=27 // pred_region
          %207 = dma.done %s200, 256
        $region32: #{tpu_custom_call.1} parent=27 // pred_fallthru
          _
        %s208 = sand.u32 %s84, 1
        %s209 = scalar_lea.sflag [#allocation7], %s208
        %s210 = sand.u32 %s84, 1
        %s211 = smul.addr %s210, 16
        %s212 = scalar_lea.vmem [#allocation6], %s211
        // Predicated region
        $region33: #{tpu_custom_call.1} parent=27 // pred_check
          %p213 = pneg %p97
        $region34: #{tpu_custom_call.1} parent=27 // pred_check_branch
          %215 = sbr.rel (%p213) target = $region36
        $region35: #{tpu_custom_call.1} parent=27 // pred_region
          %216 = dma.done %s209, 256
        $region36: #{tpu_custom_call.1} parent=27 // pred_fallthru
          _
        %s217 = sand.u32 %s50, 1
        %s218 = scalar_lea.sflag [#allocation4], %s217
        %s219 = sand.u32 %s50, 1
        %s220 = smul.addr %s219, 16
        %s221 = scalar_lea.vmem [#allocation3], %s220
        %p222 = pneg %p63
        %p223 = pneg %p60
        %s224 = sand.u32 %s84, 1
        %s225 = scalar_lea.sflag [#allocation7], %s224
        %s226 = sand.u32 %s84, 1
        %s227 = smul.addr %s226, 16
        %s228 = scalar_lea.vmem [#allocation6], %s227
        %p229 = pneg %p97
        %p230 = pneg %p94
        %p231 = pneg %p123
        %p232 = pneg %p120
        %s233 = sand.u32 %s110, 1
        %s234 = scalar_lea.sflag [#allocation5], %s233
        %s235 = sand.u32 %s110, 1
        %s236 = scalar_lea.vmem [#allocation8], %s235
        %s237 = smul.u32 %s26, 2
        %s238 = sadd.s32 %s237, %s27
        %p239 = scmp.lt.s32.totalorder %s238, 3
        %s240 = scalar_select %p239, %s238, 3
        %s241 = smul.u32 2, %s240
        %s242 = smul.u32 %s26, 2
        %s243 = sadd.s32 %s242, %s27
        %p244 = scmp.lt.s32.totalorder %s243, 3
        %s245 = scalar_select %p244, %s243, 3
        %s246 = smul.u32 2, %s245
        %p247 = scmp.eq.s32.totalorder %s27, 0
        // Predicated region
        $region37: #{tpu_custom_call.1} parent=27 // pred_check
          %p248 = pneg %p247
        $region38: #{tpu_custom_call.1} parent=27 // pred_check_branch
          %250 = sbr.rel (%p248) target = $region40
        $region39: #{tpu_custom_call.1} parent=27 // pred_region
          %vm251 = vcmask 7168
          %252 = vst.msk [vmem:[#allocation2] sm:$0xff] %vm251, 0.0
          %253 = vst.msk [vmem:[#allocation2 + $0x8] sm:$0xff] %vm251, 0.0
        $region40: #{tpu_custom_call.1} parent=27 // pred_fallthru
          _
        %v254 = vld [vmem:[%s203] sm:$0xff]
        %v255 = vld [vmem:[%s203 + $0x8] sm:$0xff]
        %v256 = vmul.f32 %v254, 0.25
        %v257 = vmul.f32 %v255, 0.25
        %v258 = vld [vmem:[%s212] sm:$0xff]
        %v259 = vld [vmem:[%s212 + $0x8] sm:$0xff]
        %v260 = vmul.f32 %v258, 0.25
        %v261 = vmul.f32 %v259, 0.25
        %vm262 = vcmask 818176
        %v263 = vsel %vm262, %v256, -inf
        %264 = vmax.xlane.f32.xlu0 %v263
        %v265 = vpop.xlane.xlu0 %264
        %v266 = vsel %vm262, %v257, -inf
        %267 = vmax.xlane.f32.xlu0 %v266
        %v268 = vpop.xlane.xlu0 %267
        %v269 = vsub.f32 %v256, %v265
        %v270 = vsub.f32 %v257, %v268
        %v271 = vsel %vm262, %v260, -inf
        %272 = vmax.xlane.f32.xlu0 %v271
        %v273 = vpop.xlane.xlu0 %272
        %v274 = vsel %vm262, %v261, -inf
        %275 = vmax.xlane.f32.xlu0 %v274
        %v276 = vpop.xlane.xlu0 %275
        %v277 = vsub.f32 %v260, %v273
        %v278 = vsub.f32 %v261, %v276
        %v279 = vmul.f32 %v269, 1.442695
        %v280 = vpow.pop %v279
        %v281 = vmul.f32 %v270, 1.442695
        %v282 = vpow.pop %v281
        %v283 = vsel %vm262, %v280, 0.0
        %284 = vadd.xlane.f32.xlu0 %v283
        %v285 = vpop.xlane.xlu0 %284
        %v286 = vsel %vm262, %v282, 0.0
        %287 = vadd.xlane.f32.xlu0 %v286
        %v288 = vpop.xlane.xlu0 %287
        %v289 = vmul.f32 %v277, 1.442695
        %v290 = vpow.pop %v289
        %v291 = vmul.f32 %v278, 1.442695
        %v292 = vpow.pop %v291
        %v293 = vsel %vm262, %v290, 0.0
        %294 = vadd.xlane.f32.xlu0 %v293
        %v295 = vpop.xlane.xlu0 %294
        %v296 = vsel %vm262, %v292, 0.0
        %297 = vadd.xlane.f32.xlu0 %v296
        %v298 = vpop.xlane.xlu0 %297
        %v299 = vsub.f32 %v277, %v269
        %v300 = vsub.f32 %v278, %v270
        %v301 = vmul.f32 %v290, %v299
        %v302 = vmul.f32 %v292, %v300
        %v303 = vsel %vm262, %v301, 0.0
        %304 = vadd.xlane.f32.xlu0 %v303
        %v305 = vpop.xlane.xlu0 %304
        %v306 = vsel %vm262, %v302, 0.0
        %307 = vadd.xlane.f32.xlu0 %v306
        %v308 = vpop.xlane.xlu0 %307
        %v309 = vrcp.pop %v295
        %v310 = vrcp.pop %v298
        %v311 = vmul.f32 %v305, %v309
        %v312 = vmul.f32 %v308, %v310
        %v313 = vlog2.pop %v285
        %v314 = vmul.f32 %v313, 0.6931472
        %v315 = vlog2.pop %v288
        %v316 = vmul.f32 %v315, 0.6931472
        %v317 = vadd.f32 %v311, %v314
        %v318 = vadd.f32 %v312, %v316
        %v319 = vlog2.pop %v295
        %v320 = vmul.f32 %v319, 0.6931472
        %v321 = vlog2.pop %v298
        %v322 = vmul.f32 %v321, 0.6931472
        %v323 = vsub.f32 %v317, %v320
        %v324 = vsub.f32 %v318, %v322
        %v325 = vld [vmem:[#allocation2] sm:$0xff]
        %v326 = vld [vmem:[#allocation2 + $0x8] sm:$0xff]
        %v327 = vadd.f32 %v325, %v323
        %v328 = vadd.f32 %v326, %v324
        %vm329 = vcmask 7168
        %330 = vst.msk [vmem:[#allocation2] sm:$0xff] %vm329, %v327
        %331 = vst.msk [vmem:[#allocation2 + $0x8] sm:$0xff] %vm329, %v328
        %p332 = scmp.eq.s32.totalorder %s27, 1
        // Predicated region
        $region41: #{tpu_custom_call.1} parent=27 // pred_check
          %p333 = pneg %p332
        $region42: #{tpu_custom_call.1} parent=27 // pred_check_branch
          %335 = sbr.rel (%p333) target = $region44
        $region43: #{tpu_custom_call.1} parent=27 // pred_region
          %v336 = vld [vmem:[#allocation2] sm:$0xff]
          %v337 = vld [vmem:[#allocation2 + $0x8] sm:$0xff]
          %v338 = vsel %vm329, %v336, 0.0
          %v339 = vsel %vm329, %v337, 0.0
          %v340 = vadd.f32 %v338, %v339
          %341 = vadd.xlane.f32.xlu0 %v340
          %v342 = vpop.xlane.xlu0 %341
          %v343 = vrot.slane %v342, 4
          %v344 = vadd.f32 %v342, %v343
          %v345 = vrot.slane %v344, 2
          %v346 = vadd.f32 %v344, %v345
          %v347 = vrot.slane %v346, 1
          %v348 = vadd.f32 %v346, %v347
          %s349 = vtos %v348
          %v350 = vstv %s349
          %351 = vst [vmem:[%s236] sm:$0x1] %v350
        $region44: #{tpu_custom_call.1} parent=27 // pred_fallthru
          _
        %s352 = sand.u32 %s110, 1
        %s353 = scalar_lea.sflag [#allocation5], %s352
        %s354 = sand.u32 %s110, 1
        %s355 = scalar_lea.vmem [#allocation8], %s354
        // Predicated region
        $region45: #{tpu_custom_call.1} parent=27 // pred_check
          %p356 = pneg %p120
        $region46: #{tpu_custom_call.1} parent=27 // pred_check_branch
          %358 = sbr.rel (%p356) target = $region48
        $region47: #{tpu_custom_call.1} parent=27 // pred_region
          %s360 = ssub.s32 16, 16
          %361 = vsyncadd %s353, %s360
          %s362 = smul.addr %s26, 16
          %s363 = scalar_lea.hbm %s2, %s362
          %s365 = sshll.u32 %s355, 4
          %s366 = int_to_ptr.vmem [resolvable:$true] %s365
          %368 = dma.vmem_to_hbm [thread:$0]  %s366, 16, %s363, %s353
        $region48: #{tpu_custom_call.1} parent=27 // pred_fallthru
          _
      $region28: #{tpu_custom_call.1} parent=5 // pred_fallthru
        _
      %p369 = scmp.le.s32.totalorder 2, %s17
      // Predicated region
      $region49: #{tpu_custom_call.1} parent=5 // pred_check
        %p370 = pneg %p369
      $region50: #{tpu_custom_call.1} parent=5 // pred_check_branch
        %372 = sbr.rel (%p370) target = $region52
      $region51: #{tpu_custom_call.1} parent=5 // pred_region
        %s373 = ssub.s32 %s17, 2
        // Predicated region
        $region53: #{tpu_custom_call.1} parent=51 // pred_check
          %p374 = pneg %p126
        $region54: #{tpu_custom_call.1} parent=51 // pred_check_branch
          %376 = sbr.rel (%p374) target = $region56
        $region55: #{tpu_custom_call.1} parent=51 // pred_region
          %s377 = sand.u32 %s111, 1
          %s378 = scalar_lea.sflag [#allocation5], %s377
          %s379 = sand.u32 %s111, 1
          %s380 = scalar_lea.vmem [#allocation8], %s379
          %381 = dma.done %s378, 16
        $region56: #{tpu_custom_call.1} parent=51 // pred_fallthru
          _
      $region52: #{tpu_custom_call.1} parent=5 // pred_fallthru
        _
    $region6: #{tpu_custom_call.1} parent=1 // loop_footer
      %s21 = sadd.s32 1, %s17
    $region7: #{tpu_custom_call.1} parent=1 // loop_footer_branch
      %16 = sbr.rel target = $region3
    $region8: #{tpu_custom_call.1} parent=1 // loop_exit
      _
    %382 = vsyncpa [#allocation4], 1
    %s383 = scalar_lea.sflag [#allocation4], 1
    %384 = vsyncpa %s383, 1
    %385 = vsyncpa [#allocation7], 1
    %s386 = scalar_lea.sflag [#allocation7], 1
    %387 = vsyncpa %s386, 1
    %388 = vsyncpa [#allocation5], 1
    %s389 = scalar_lea.sflag [#allocation5], 1
    %390 = vsyncpa %s389, 1

</llo_original>
